<compile_context>
chip_gen: v7x
topology: tpu7x:2x2x1
jax: 0.10.0
libtpu: 0.0.40
codegen_flags: <defaults>
</compile_context>

<pallas_src>
import functools

import jax
import jax.numpy as jnp
from jax.experimental import pallas as pl
from jax.experimental.pallas import tpu as pltpu

LEAKY_SLOPE = 0.2
N_PIECES = 5
LANE = 128
SUBLANE = 8


def _round_up(x, m):
    return (x + m - 1) // m * m


# ------------------------------- kernel ------------------------------------ #

def _fused_disc_kernel(x_ref, w1_ref, b1_ref, w2_ref, b2_ref, w3_ref, b3_ref,
                       w4_ref, b4_ref, o_ref, *, pads):
    """Fused Discriminator forward for one batch tile.

    Maxout weights are packed as (n_in_pad, N_PIECES * n_out_pad): one matmul
    per layer, then an unrolled max over lane-aligned 128-wide piece slices.
    """

    def maxout_lrelu(h, w_ref, b_ref, n_out_pad):
        # Single MXU issue covering all 5 pieces.
        y = (jnp.dot(h, w_ref[...], preferred_element_type=jnp.float32)
             + b_ref[...])                                   # (TB, P*n_out_pad)
        m = y[:, :n_out_pad]
        for p in range(1, N_PIECES):                          # static, unrolled
            m = jnp.maximum(m, y[:, p * n_out_pad:(p + 1) * n_out_pad])
        # leaky_relu(0.2): slope < 1  =>  max(m, 0.2*m)  (vmul + vmax)
        return jnp.maximum(m, LEAKY_SLOPE * m)

    h = maxout_lrelu(x_ref[...], w1_ref, b1_ref, pads[0])
    h = maxout_lrelu(h, w2_ref, b2_ref, pads[1])
    h = maxout_lrelu(h, w3_ref, b3_ref, pads[2])

    y = (jnp.dot(h, w4_ref[...], preferred_element_type=jnp.float32)
         + b4_ref[...])
    # sigmoid(y) == 0.5 * tanh(y / 2) + 0.5  -> single EUP op, no overflow.
    o_ref[...] = 0.5 * jnp.tanh(0.5 * y) + 0.5


# ------------------------- parameter packing ------------------------------- #

def pack_params(params, layers):
    """Pack PyTorch-layout params into lane-padded, MXU-friendly layouts."""
    a, b, c, d, e = layers
    b_pad, c_pad, d_pad, e_pad = (_round_up(n, LANE) for n in (b, c, d, e))

    def pack_maxout(w, bias, n_in, n_in_pad, n_out, n_out_pad):
        # w: (P, n_out, n_in)  bias: (P, n_out)   (PyTorch Maxout layout)
        wt = jnp.transpose(w, (2, 0, 1))                      # (n_in, P, n_out)
        w_full = jnp.zeros((n_in_pad, N_PIECES, n_out_pad), jnp.float32)
        w_full = w_full.at[:n_in, :, :n_out].set(wt)
        b_full = jnp.zeros((1, N_PIECES, n_out_pad), jnp.float32)
        b_full = b_full.at[0, :, :n_out].set(bias)
        return (w_full.reshape(n_in_pad, N_PIECES * n_out_pad),
                b_full.reshape(1, N_PIECES * n_out_pad))

    w1, b1 = pack_maxout(params["w1"], params["b1"], a, a, b, b_pad)
    w2, b2 = pack_maxout(params["w2"], params["b2"], b, b_pad, c, c_pad)
    w3, b3 = pack_maxout(params["w3"], params["b3"], c, c_pad, d, d_pad)

    # nn.Linear: weight (e, d), bias (e,)  ->  (d_pad, e_pad), (1, e_pad)
    w4 = jnp.zeros((d_pad, e_pad), jnp.float32).at[:d, :e].set(params["w4"].T)
    b4 = jnp.zeros((1, e_pad), jnp.float32).at[0, :e].set(params["b4"])

    return (w1, b1, w2, b2, w3, b3, w4, b4), (b_pad, c_pad, d_pad, e_pad)


# ------------------------------- wrapper ------------------------------------ #

def discriminator_forward(x, params, *, layers):
    a, b, c, d, e = layers
    batch = x.shape[0]

    packed, (b_pad, c_pad, d_pad, e_pad) = pack_params(params, layers)

    # Batch tiling: pad to a multiple of the sublane count, tile at <=128 rows,
    # mark the batch axis "parallel" (uses both TCs on v7x, no-op on v5e/v6e).
    batch_pad = _round_up(batch, SUBLANE)
    tb = min(128, batch_pad)
    batch_pad = _round_up(batch_pad, tb)
    grid = (batch_pad // tb,)

    x_p = jnp.zeros((batch_pad, a), jnp.float32).at[:batch, :].set(
        x.astype(jnp.float32))

    def whole_array_spec(arr):
        # Weights/biases: full-array block, constant index_map -> DMA'd once,
        # resident in VMEM across all batch tiles.
        return pl.BlockSpec(arr.shape, lambda i, _nd=arr.ndim: (0,) * _nd)

    in_specs = ([pl.BlockSpec((tb, a), lambda i: (i, 0))]
                + [whole_array_spec(p) for p in packed])
    out_spec = pl.BlockSpec((tb, e_pad), lambda i: (i, 0))

    kernel = functools.partial(_fused_disc_kernel, pads=(b_pad, c_pad, d_pad))

    out_pad = pl.pallas_call(
        kernel,
        out_shape=jax.ShapeDtypeStruct((batch_pad, e_pad), jnp.float32),
        grid=grid,
        in_specs=in_specs,
        out_specs=out_spec,
        compiler_params=pltpu.CompilerParams(
            dimension_semantics=("parallel",)),
    )(x_p, *packed)

    return out_pad[:batch, :e]


# --------------------------- parameter init --------------------------------- #

def init_params(key, layers):
    """Deterministic init mirroring the PyTorch module's init distributions.

    Shapes follow PyTorch: Maxout weight (P, n_out, n_in), bias (P, n_out);
    Linear weight (e, d), bias (e,).
    """
    a, b, c, d, e = layers
    keys = jax.random.split(key, 8)

    def maxout_init(kw, kb, n_in, n_out):
        stdv = 1.0 / (n_out ** 0.5)            # Maxout.reset_parameters
        w = jax.random.uniform(kw, (N_PIECES, n_out, n_in), jnp.float32,
                               minval=-stdv, maxval=stdv)
        bias = jax.random.uniform(kb, (N_PIECES, n_out), jnp.float32,
                                  minval=-stdv, maxval=stdv)
        return w, bias

    w1, b1 = maxout_init(keys[0], keys[1], a, b)
    w2, b2 = maxout_init(keys[2], keys[3], b, c)
    w3, b3 = maxout_init(keys[4], keys[5], c, d)

    stdv = 1.0 / (d ** 0.5)                    # nn.Linear default init
    w4 = jax.random.uniform(keys[6], (e, d), jnp.float32,
                            minval=-stdv, maxval=stdv)
    b4 = jax.random.uniform(keys[7], (e,), jnp.float32,
                            minval=-stdv, maxval=stdv)

    return {"w1": w1, "b1": b1, "w2": w2, "b2": b2,
            "w3": w3, "b3": b3, "w4": w4, "b4": b4}


# ---------------------------------- main ------------------------------------ #

if __name__ == "__main__":
    layers = (32, 64, 64, 32, 1)   # (a, b, c, d, e)
    batch = 8

    key = jax.random.PRNGKey(0)
    k_x, k_p = jax.random.split(key)

    x = jax.random.normal(k_x, (batch, layers[0]), dtype=jnp.float32)
    params = init_params(k_p, layers)

    fwd = jax.jit(functools.partial(discriminator_forward, layers=layers))
    out = jax.block_until_ready(fwd(x, params))

    assert out.shape == (batch, layers[-1]), out.shape
    assert bool(jnp.all(jnp.isfinite(out)))
    assert bool(jnp.all((out >= -1e-5) & (out <= 1.0 + 1e-5)))
    print("KERNEL_OK")
</pallas_src>

<mosaic_0001>
module attributes {stable_mosaic.version = 11 : i64} {
  func.func @_fused_disc_kernel(%arg0: i32, %arg1: memref<8x32xf32, #tpu.memory_space<vmem>>, %arg2: memref<32x640xf32, #tpu.memory_space<vmem>>, %arg3: memref<1x640xf32, #tpu.memory_space<vmem>>, %arg4: memref<128x640xf32, #tpu.memory_space<vmem>>, %arg5: memref<1x640xf32, #tpu.memory_space<vmem>>, %arg6: memref<128x640xf32, #tpu.memory_space<vmem>>, %arg7: memref<1x640xf32, #tpu.memory_space<vmem>>, %arg8: memref<128x128xf32, #tpu.memory_space<vmem>>, %arg9: memref<1x128xf32, #tpu.memory_space<vmem>>, %arg10: memref<8x128xf32, #tpu.memory_space<vmem>>) attributes {dimension_semantics = [#tpu.dimension_semantics<parallel>], iteration_bounds = array<i64: 1>, scalar_prefetch = 0 : i64, scratch_operands = 0 : i64, tpu.core_type = #tpu.core_type<tc>, window_params = [{transform_indices = @transform_0, window_bounds = array<i64: 8, 32>}, {pipeline_mode = #tpu.pipeline_mode<synchronous>, transform_indices = @transform_1, window_bounds = array<i64: 32, 640>}, {pipeline_mode = #tpu.pipeline_mode<synchronous>, transform_indices = @transform_2, window_bounds = array<i64: 1, 640>}, {pipeline_mode = #tpu.pipeline_mode<synchronous>, transform_indices = @transform_3, window_bounds = array<i64: 128, 640>}, {pipeline_mode = #tpu.pipeline_mode<synchronous>, transform_indices = @transform_4, window_bounds = array<i64: 1, 640>}, {pipeline_mode = #tpu.pipeline_mode<synchronous>, transform_indices = @transform_5, window_bounds = array<i64: 128, 640>}, {pipeline_mode = #tpu.pipeline_mode<synchronous>, transform_indices = @transform_6, window_bounds = array<i64: 1, 640>}, {pipeline_mode = #tpu.pipeline_mode<synchronous>, transform_indices = @transform_7, window_bounds = array<i64: 128, 128>}, {pipeline_mode = #tpu.pipeline_mode<synchronous>, transform_indices = @transform_8, window_bounds = array<i64: 1, 128>}, {transform_indices = @transform_9, window_bounds = array<i64: 8, 128>}]} {
    %c0 = arith.constant 0 : index
    %c0_0 = arith.constant 0 : index
    %0 = vector.load %arg1[%c0, %c0_0] : memref<8x32xf32, #tpu.memory_space<vmem>>, vector<8x32xf32>
    %c0_1 = arith.constant 0 : index
    %c0_2 = arith.constant 0 : index
    %1 = vector.load %arg2[%c0_1, %c0_2] : memref<32x640xf32, #tpu.memory_space<vmem>>, vector<32x640xf32>
    %cst = arith.constant dense<0.000000e+00> : vector<8x640xf32>
    %2 = tpu.matmul %0, %1, %cst {dimension_numbers = #tpu.dot_dimension_numbers<[1], [0], [0], [1], [0, 0, 1, 1], [], []>} : vector<8x32xf32>, vector<32x640xf32>, vector<8x640xf32> -> vector<8x640xf32>
    %c0_3 = arith.constant 0 : index
    %c0_4 = arith.constant 0 : index
    %3 = vector.load %arg3[%c0_3, %c0_4] : memref<1x640xf32, #tpu.memory_space<vmem>>, vector<1x640xf32>
    %4 = vector.broadcast %3 : vector<1x640xf32> to vector<8x640xf32>
    %5 = arith.addf %2, %4 : vector<8x640xf32>
    %6 = vector.extract_strided_slice %5 {offsets = [0, 0], sizes = [8, 128], strides = [1, 1]} : vector<8x640xf32> to vector<8x128xf32>
    %7 = vector.extract_strided_slice %5 {offsets = [0, 128], sizes = [8, 128], strides = [1, 1]} : vector<8x640xf32> to vector<8x128xf32>
    %8 = arith.maximumf %6, %7 : vector<8x128xf32>
    %9 = vector.extract_strided_slice %5 {offsets = [0, 256], sizes = [8, 128], strides = [1, 1]} : vector<8x640xf32> to vector<8x128xf32>
    %10 = arith.maximumf %8, %9 : vector<8x128xf32>
    %11 = vector.extract_strided_slice %5 {offsets = [0, 384], sizes = [8, 128], strides = [1, 1]} : vector<8x640xf32> to vector<8x128xf32>
    %12 = arith.maximumf %10, %11 : vector<8x128xf32>
    %13 = vector.extract_strided_slice %5 {offsets = [0, 512], sizes = [8, 128], strides = [1, 1]} : vector<8x640xf32> to vector<8x128xf32>
    %14 = arith.maximumf %12, %13 : vector<8x128xf32>
    %cst_5 = arith.constant 2.000000e-01 : f32
    %15 = vector.broadcast %cst_5 : f32 to vector<8x128xf32>
    %16 = arith.mulf %15, %14 : vector<8x128xf32>
    %17 = arith.maximumf %14, %16 : vector<8x128xf32>
    %c0_6 = arith.constant 0 : index
    %c0_7 = arith.constant 0 : index
    %18 = vector.load %arg4[%c0_6, %c0_7] : memref<128x640xf32, #tpu.memory_space<vmem>>, vector<128x640xf32>
    %cst_8 = arith.constant dense<0.000000e+00> : vector<8x640xf32>
    %19 = tpu.matmul %17, %18, %cst_8 {dimension_numbers = #tpu.dot_dimension_numbers<[1], [0], [0], [1], [0, 0, 1, 1], [], []>} : vector<8x128xf32>, vector<128x640xf32>, vector<8x640xf32> -> vector<8x640xf32>
    %c0_9 = arith.constant 0 : index
    %c0_10 = arith.constant 0 : index
    %20 = vector.load %arg5[%c0_9, %c0_10] : memref<1x640xf32, #tpu.memory_space<vmem>>, vector<1x640xf32>
    %21 = vector.broadcast %20 : vector<1x640xf32> to vector<8x640xf32>
    %22 = arith.addf %19, %21 : vector<8x640xf32>
    %23 = vector.extract_strided_slice %22 {offsets = [0, 0], sizes = [8, 128], strides = [1, 1]} : vector<8x640xf32> to vector<8x128xf32>
    %24 = vector.extract_strided_slice %22 {offsets = [0, 128], sizes = [8, 128], strides = [1, 1]} : vector<8x640xf32> to vector<8x128xf32>
    %25 = arith.maximumf %23, %24 : vector<8x128xf32>
    %26 = vector.extract_strided_slice %22 {offsets = [0, 256], sizes = [8, 128], strides = [1, 1]} : vector<8x640xf32> to vector<8x128xf32>
    %27 = arith.maximumf %25, %26 : vector<8x128xf32>
    %28 = vector.extract_strided_slice %22 {offsets = [0, 384], sizes = [8, 128], strides = [1, 1]} : vector<8x640xf32> to vector<8x128xf32>
    %29 = arith.maximumf %27, %28 : vector<8x128xf32>
    %30 = vector.extract_strided_slice %22 {offsets = [0, 512], sizes = [8, 128], strides = [1, 1]} : vector<8x640xf32> to vector<8x128xf32>
    %31 = arith.maximumf %29, %30 : vector<8x128xf32>
    %cst_11 = arith.constant 2.000000e-01 : f32
    %32 = vector.broadcast %cst_11 : f32 to vector<8x128xf32>
    %33 = arith.mulf %32, %31 : vector<8x128xf32>
    %34 = arith.maximumf %31, %33 : vector<8x128xf32>
    %c0_12 = arith.constant 0 : index
    %c0_13 = arith.constant 0 : index
    %35 = vector.load %arg6[%c0_12, %c0_13] : memref<128x640xf32, #tpu.memory_space<vmem>>, vector<128x640xf32>
    %cst_14 = arith.constant dense<0.000000e+00> : vector<8x640xf32>
    %36 = tpu.matmul %34, %35, %cst_14 {dimension_numbers = #tpu.dot_dimension_numbers<[1], [0], [0], [1], [0, 0, 1, 1], [], []>} : vector<8x128xf32>, vector<128x640xf32>, vector<8x640xf32> -> vector<8x640xf32>
    %c0_15 = arith.constant 0 : index
    %c0_16 = arith.constant 0 : index
    %37 = vector.load %arg7[%c0_15, %c0_16] : memref<1x640xf32, #tpu.memory_space<vmem>>, vector<1x640xf32>
    %38 = vector.broadcast %37 : vector<1x640xf32> to vector<8x640xf32>
    %39 = arith.addf %36, %38 : vector<8x640xf32>
    %40 = vector.extract_strided_slice %39 {offsets = [0, 0], sizes = [8, 128], strides = [1, 1]} : vector<8x640xf32> to vector<8x128xf32>
    %41 = vector.extract_strided_slice %39 {offsets = [0, 128], sizes = [8, 128], strides = [1, 1]} : vector<8x640xf32> to vector<8x128xf32>
    %42 = arith.maximumf %40, %41 : vector<8x128xf32>
    %43 = vector.extract_strided_slice %39 {offsets = [0, 256], sizes = [8, 128], strides = [1, 1]} : vector<8x640xf32> to vector<8x128xf32>
    %44 = arith.maximumf %42, %43 : vector<8x128xf32>
    %45 = vector.extract_strided_slice %39 {offsets = [0, 384], sizes = [8, 128], strides = [1, 1]} : vector<8x640xf32> to vector<8x128xf32>
    %46 = arith.maximumf %44, %45 : vector<8x128xf32>
    %47 = vector.extract_strided_slice %39 {offsets = [0, 512], sizes = [8, 128], strides = [1, 1]} : vector<8x640xf32> to vector<8x128xf32>
    %48 = arith.maximumf %46, %47 : vector<8x128xf32>
    %cst_17 = arith.constant 2.000000e-01 : f32
    %49 = vector.broadcast %cst_17 : f32 to vector<8x128xf32>
    %50 = arith.mulf %49, %48 : vector<8x128xf32>
    %51 = arith.maximumf %48, %50 : vector<8x128xf32>
    %c0_18 = arith.constant 0 : index
    %c0_19 = arith.constant 0 : index
    %52 = vector.load %arg8[%c0_18, %c0_19] : memref<128x128xf32, #tpu.memory_space<vmem>>, vector<128x128xf32>
    %cst_20 = arith.constant dense<0.000000e+00> : vector<8x128xf32>
    %53 = tpu.matmul %51, %52, %cst_20 {dimension_numbers = #tpu.dot_dimension_numbers<[1], [0], [0], [1], [0, 0, 1, 1], [], []>} : vector<8x128xf32>, vector<128x128xf32>, vector<8x128xf32> -> vector<8x128xf32>
    %c0_21 = arith.constant 0 : index
    %c0_22 = arith.constant 0 : index
    %54 = vector.load %arg9[%c0_21, %c0_22] : memref<1x128xf32, #tpu.memory_space<vmem>>, vector<1x128xf32>
    %55 = vector.broadcast %54 : vector<1x128xf32> to vector<8x128xf32>
    %56 = arith.addf %53, %55 : vector<8x128xf32>
    %cst_23 = arith.constant 5.000000e-01 : f32
    %57 = vector.broadcast %cst_23 : f32 to vector<8x128xf32>
    %58 = arith.mulf %57, %56 : vector<8x128xf32>
    %59 = math.tanh %58 : vector<8x128xf32>
    %cst_24 = arith.constant 5.000000e-01 : f32
    %60 = vector.broadcast %cst_24 : f32 to vector<8x128xf32>
    %61 = arith.mulf %60, %59 : vector<8x128xf32>
    %cst_25 = arith.constant 5.000000e-01 : f32
    %62 = vector.broadcast %cst_25 : f32 to vector<8x128xf32>
    %63 = arith.addf %61, %62 : vector<8x128xf32>
    %c0_26 = arith.constant 0 : index
    %c0_27 = arith.constant 0 : index
    %64 = vector.load %arg10[%c0_26, %c0_27] : memref<8x128xf32, #tpu.memory_space<vmem>>, vector<8x128xf32>
    tpu.vector_store %arg10[%c0_26, %c0_27], %63 {strides = array<i32>} : memref<8x128xf32, #tpu.memory_space<vmem>>, vector<8x128xf32>,
    return
  }
  func.func @transform_0(%arg0: i32) -> (i32, i32) {
    %c0_i32 = arith.constant 0 : i32
    %c0_i32_0 = arith.constant 0 : i32
    return %arg0, %c0_i32 : i32, i32
  }
  func.func @transform_1(%arg0: i32) -> (i32, i32) {
    %c0_i32 = arith.constant 0 : i32
    %c0_i32_0 = arith.constant 0 : i32
    %c0_i32_1 = arith.constant 0 : i32
    return %c0_i32, %c0_i32_0 : i32, i32
  }
  func.func @transform_2(%arg0: i32) -> (i32, i32) {
    %c0_i32 = arith.constant 0 : i32
    %c0_i32_0 = arith.constant 0 : i32
    %c0_i32_1 = arith.constant 0 : i32
    return %c0_i32, %c0_i32_0 : i32, i32
  }
  func.func @transform_3(%arg0: i32) -> (i32, i32) {
    %c0_i32 = arith.constant 0 : i32
    %c0_i32_0 = arith.constant 0 : i32
    %c0_i32_1 = arith.constant 0 : i32
    return %c0_i32, %c0_i32_0 : i32, i32
  }
  func.func @transform_4(%arg0: i32) -> (i32, i32) {
    %c0_i32 = arith.constant 0 : i32
    %c0_i32_0 = arith.constant 0 : i32
    %c0_i32_1 = arith.constant 0 : i32
    return %c0_i32, %c0_i32_0 : i32, i32
  }
  func.func @transform_5(%arg0: i32) -> (i32, i32) {
    %c0_i32 = arith.constant 0 : i32
    %c0_i32_0 = arith.constant 0 : i32
    %c0_i32_1 = arith.constant 0 : i32
    return %c0_i32, %c0_i32_0 : i32, i32
  }
  func.func @transform_6(%arg0: i32) -> (i32, i32) {
    %c0_i32 = arith.constant 0 : i32
    %c0_i32_0 = arith.constant 0 : i32
    %c0_i32_1 = arith.constant 0 : i32
    return %c0_i32, %c0_i32_0 : i32, i32
  }
  func.func @transform_7(%arg0: i32) -> (i32, i32) {
    %c0_i32 = arith.constant 0 : i32
    %c0_i32_0 = arith.constant 0 : i32
    %c0_i32_1 = arith.constant 0 : i32
    return %c0_i32, %c0_i32_0 : i32, i32
  }
  func.func @transform_8(%arg0: i32) -> (i32, i32) {
    %c0_i32 = arith.constant 0 : i32
    %c0_i32_0 = arith.constant 0 : i32
    %c0_i32_1 = arith.constant 0 : i32
    return %c0_i32, %c0_i32_0 : i32, i32
  }
  func.func @transform_9(%arg0: i32) -> (i32, i32) {
    %c0_i32 = arith.constant 0 : i32
    %c0_i32_0 = arith.constant 0 : i32
    return %arg0, %c0_i32 : i32, i32
  }
}

</mosaic_0001>

<llo_original>
// kernel: discriminator_forward.1
$region0: #{discriminator_forward.1}
  #allocation0 [shape = 'u32[]', space=smem, size = 0x4, offset = 0x4, fixed_abs, tag = 'smem constant byte address 0x4 - core index']
  #allocation1 [shape = 'u32[144,128]{1,0:T(1,128)}', space=vmem, size = 0x12000, scoped, tag = 'internal scratch']
  %s0 = inlined_call_operand.vmem [shape: f32[8,32], index: 0, kind: input, shape index: {}]
  %s1 = inlined_call_operand.vmem [shape: f32[32,640], index: 1, kind: input, shape index: {}]
  %s2 = inlined_call_operand.vmem [shape: f32[1,640], index: 2, kind: input, shape index: {}]
  %s3 = inlined_call_operand.vmem [shape: f32[128,640], index: 3, kind: input, shape index: {}]
  %s4 = inlined_call_operand.vmem [shape: f32[1,640], index: 4, kind: input, shape index: {}]
  %s5 = inlined_call_operand.vmem [shape: f32[128,640], index: 5, kind: input, shape index: {}]
  %s6 = inlined_call_operand.vmem [shape: f32[1,640], index: 6, kind: input, shape index: {}]
  %s7 = inlined_call_operand.vmem [shape: f32[128,128], index: 7, kind: input, shape index: {}]
  %s8 = inlined_call_operand.vmem [shape: f32[1,128], index: 8, kind: input, shape index: {}]
  %s9 = inlined_call_operand.vmem [shape: f32[8,128], index: 9, kind: output, shape index: {}]
  %s10 = sld [smem:[#allocation0]]
  $region46: #{discriminator_forward.1} parent=0
    _
  %s12 = ssub.s32 1, %s10
  %s13 = scalar_select 0, %s12, %s10
  // Predicated region
  $region2: #{discriminator_forward.1} parent=0 // pred_check
    _
  $region3: #{discriminator_forward.1} parent=0 // pred_check_branch
    %15 = sbr.rel (0) target = $region5
  $region4: #{discriminator_forward.1} parent=0 // pred_region
    _
  $region5: #{discriminator_forward.1} parent=0 // pred_fallthru
    _
  // Predicated region
  $region6: #{discriminator_forward.1} parent=0 // pred_check
    _
  $region7: #{discriminator_forward.1} parent=0 // pred_check_branch
    %17 = sbr.rel (0) target = $region9
  $region8: #{discriminator_forward.1} parent=0 // pred_region
    _
  $region9: #{discriminator_forward.1} parent=0 // pred_fallthru
    _
  // Predicated region
  $region10: #{discriminator_forward.1} parent=0 // pred_check
    _
  $region11: #{discriminator_forward.1} parent=0 // pred_check_branch
    %19 = sbr.rel (0) target = $region13
  $region12: #{discriminator_forward.1} parent=0 // pred_region
    _
  $region13: #{discriminator_forward.1} parent=0 // pred_fallthru
    _
  // Predicated region
  $region14: #{discriminator_forward.1} parent=0 // pred_check
    _
  $region15: #{discriminator_forward.1} parent=0 // pred_check_branch
    %21 = sbr.rel (0) target = $region17
  $region16: #{discriminator_forward.1} parent=0 // pred_region
    _
  $region17: #{discriminator_forward.1} parent=0 // pred_fallthru
    _
  // Predicated region
  $region18: #{discriminator_forward.1} parent=0 // pred_check
    _
  $region19: #{discriminator_forward.1} parent=0 // pred_check_branch
    %23 = sbr.rel (0) target = $region21
  $region20: #{discriminator_forward.1} parent=0 // pred_region
    _
  $region21: #{discriminator_forward.1} parent=0 // pred_fallthru
    _
  // Predicated region
  $region22: #{discriminator_forward.1} parent=0 // pred_check
    _
  $region23: #{discriminator_forward.1} parent=0 // pred_check_branch
    %25 = sbr.rel (0) target = $region25
  $region24: #{discriminator_forward.1} parent=0 // pred_region
    _
  $region25: #{discriminator_forward.1} parent=0 // pred_fallthru
    _
  // Predicated region
  $region26: #{discriminator_forward.1} parent=0 // pred_check
    _
  $region27: #{discriminator_forward.1} parent=0 // pred_check_branch
    %27 = sbr.rel (0) target = $region29
  $region28: #{discriminator_forward.1} parent=0 // pred_region
    _
  $region29: #{discriminator_forward.1} parent=0 // pred_fallthru
    _
  // Predicated region
  $region30: #{discriminator_forward.1} parent=0 // pred_check
    _
  $region31: #{discriminator_forward.1} parent=0 // pred_check_branch
    %29 = sbr.rel (0) target = $region33
  $region32: #{discriminator_forward.1} parent=0 // pred_region
    _
  $region33: #{discriminator_forward.1} parent=0 // pred_fallthru
    _
  // Predicated region
  $region34: #{discriminator_forward.1} parent=0 // pred_check
    _
  $region35: #{discriminator_forward.1} parent=0 // pred_check_branch
    %31 = sbr.rel (0) target = $region37
  $region36: #{discriminator_forward.1} parent=0 // pred_region
    _
  $region37: #{discriminator_forward.1} parent=0 // pred_fallthru
    _
  %v32 = vld [vmem:[%s0] sm:$0xff]
  %v33 = vld [vmem:[%s1] sm:$0xff]
  %v34 = vld [vmem:[%s1 + $0x8] sm:$0xff]
  %v35 = vld [vmem:[%s1 + $0x10] sm:$0xff]
  %v36 = vld [vmem:[%s1 + $0x18] sm:$0xff]
  %v37 = vld [vmem:[%s1 + $0x20] sm:$0xff]
  %v38 = vld [vmem:[%s1 + $0x28] sm:$0xff]
  %v39 = vld [vmem:[%s1 + $0x30] sm:$0xff]
  %v40 = vld [vmem:[%s1 + $0x38] sm:$0xff]
  %v41 = vld [vmem:[%s1 + $0x40] sm:$0xff]
  %v42 = vld [vmem:[%s1 + $0x48] sm:$0xff]
  %v43 = vld [vmem:[%s1 + $0x50] sm:$0xff]
  %v44 = vld [vmem:[%s1 + $0x58] sm:$0xff]
  %v45 = vld [vmem:[%s1 + $0x60] sm:$0xff]
  %v46 = vld [vmem:[%s1 + $0x68] sm:$0xff]
  %v47 = vld [vmem:[%s1 + $0x70] sm:$0xff]
  %v48 = vld [vmem:[%s1 + $0x78] sm:$0xff]
  %v49 = vld [vmem:[%s1 + $0x80] sm:$0xff]
  %v50 = vld [vmem:[%s1 + $0x88] sm:$0xff]
  %v51 = vld [vmem:[%s1 + $0x90] sm:$0xff]
  %v52 = vld [vmem:[%s1 + $0x98] sm:$0xff]
  %v53 = vld [vmem:[%s2] sm:$0x1f]
  %v55 = vlaneseq
  %v56 = vshrl.u32 %v55, 7
  %v57 = vsub.s32 0, %v56
  %v58 = vrot.slane %v53, %v57
  %v59 = vlaneseq
  %v60 = vshrl.u32 %v59, 7
  %v61 = vsub.s32 1, %v60
  %v62 = vrot.slane %v53, %v61
  %v63 = vlaneseq
  %v64 = vshrl.u32 %v63, 7
  %v65 = vsub.s32 2, %v64
  %v66 = vrot.slane %v53, %v65
  %v67 = vlaneseq
  %v68 = vshrl.u32 %v67, 7
  %v69 = vsub.s32 3, %v68
  %v70 = vrot.slane %v53, %v69
  %v71 = vlaneseq
  %v72 = vshrl.u32 %v71, 7
  %v73 = vsub.s32 4, %v72
  %v74 = vrot.slane %v53, %v73
  %vm80 = vcmask 261120
  %v82 = vsel %vm80, %v32, 0
  %84 = vmatprep.subr.mxu0 %v34
  %85 = vmatpush1.msra.mxu0 %v33
  %86 = vmatprep.subr.mxu0 %v39
  %87 = vmatpush1.msra.mxu0 %v38
  %88 = vmatprep.subr.mxu0 %v44
  %89 = vmatpush1.msra.mxu0 %v43
  %90 = vmatprep.subr.mxu0 %v49
  %91 = vmatpush1.msra.mxu0 %v48
  %92 = vmatprep.subr.mxu0 0.0
  %93 = vmatpush1.msra.mxu0 0.0
  %94 = vmatprep.subr.mxu0 0.0
  %95 = vmatpush1.msra.mxu0 0.0
  %96 = vmatprep.subr.mxu0 0.0
  %97 = vmatpush1.msra.mxu0 0.0
  %98 = vmatprep.subr.mxu0 0.0
  %99 = vmatpush1.msra.mxu0 0.0
  %100 = vmatprep.subr.mxu0 0.0
  %101 = vmatpush1.msra.mxu0 0.0
  %102 = vmatprep.subr.mxu0 0.0
  %103 = vmatpush1.msra.mxu0 0.0
  %104 = vmatprep.subr.mxu0 0.0
  %105 = vmatpush1.msra.mxu0 0.0
  %106 = vmatprep.subr.mxu0 0.0
  %107 = vmatpush1.msra.mxu0 0.0
  %108 = vmatprep.subr.mxu0 0.0
  %109 = vmatpush1.msra.mxu0 0.0
  %110 = vmatprep.subr.mxu0 0.0
  %111 = vmatpush1.msra.mxu0 0.0
  %112 = vmatprep.subr.mxu0 0.0
  %113 = vmatpush1.msra.mxu0 0.0
  %114 = vmatprep.subr.mxu0 0.0
  %115 = vmatpush1.msra.mxu0 0.0
  %116 = vmatprep.subr.mxu0 0.0
  %117 = vmatpush1.msra.mxu0 0.0
  %118 = vmatprep.subr.mxu0 0.0
  %119 = vmatpush1.msra.mxu0 0.0
  %120 = vmatprep.subr.mxu0 0.0
  %121 = vmatpush1.msra.mxu0 0.0
  %122 = vmatprep.subr.mxu0 0.0
  %123 = vmatpush1.msra.mxu0 0.0
  %124 = vmatprep.subr.mxu0 0.0
  %125 = vmatpush1.msra.mxu0 0.0
  %126 = vmatprep.subr.mxu0 0.0
  %127 = vmatpush1.msra.mxu0 0.0
  %128 = vmatprep.subr.mxu0 0.0
  %129 = vmatpush1.msra.mxu0 0.0
  %130 = vmatprep.subr.mxu0 0.0
  %131 = vmatpush1.msra.mxu0 0.0
  %132 = vmatprep.subr.mxu0 0.0
  %133 = vmatpush1.msra.mxu0 0.0
  %134 = vmatprep.subr.mxu0 0.0
  %135 = vmatpush1.msra.mxu0 0.0
  %136 = vmatprep.subr.mxu0 0.0
  %137 = vmatpush1.msra.mxu0 0.0
  %138 = vmatprep.subr.mxu0 0.0
  %139 = vmatpush1.msra.mxu0 0.0
  %140 = vmatprep.subr.mxu0 0.0
  %141 = vmatpush1.msra.mxu0 0.0
  %142 = vmatprep.subr.mxu0 0.0
  %143 = vmatpush1.msra.mxu0 0.0
  %144 = vmatprep.subr.mxu0 0.0
  %145 = vmatpush1.msra.mxu0 0.0
  %146 = vmatprep.subr.mxu0 0.0
  %147 = vmatpush1.msra.mxu0 0.0
  %148 = vmatprep.mubr.f32.mxu0 0.0
  %149 = vmatmul.mubr.f32.gmra.mrb[0].mxu0 %v82
  %v150 = vpop.f32.mrb[0].mxu0
  %v151 = vadd.f32 %v58, %v150
  %v152 = vpop.f32.mrb[0].mxu0
  %v153 = vadd.f32 %v62, %v152
  %154 = vdwg.mxu0
  %155 = vmatprep.subr.mxu0 %v36
  %156 = vmatpush1.msra.mxu0 %v35
  %157 = vmatprep.subr.mxu0 %v41
  %158 = vmatpush1.msra.mxu0 %v40
  %159 = vmatprep.subr.mxu0 %v46
  %160 = vmatpush1.msra.mxu0 %v45
  %161 = vmatprep.subr.mxu0 %v51
  %162 = vmatpush1.msra.mxu0 %v50
  %163 = vmatprep.subr.mxu0 0.0
  %164 = vmatpush1.msra.mxu0 0.0
  %165 = vmatprep.subr.mxu0 0.0
  %166 = vmatpush1.msra.mxu0 0.0
  %167 = vmatprep.subr.mxu0 0.0
  %168 = vmatpush1.msra.mxu0 0.0
  %169 = vmatprep.subr.mxu0 0.0
  %170 = vmatpush1.msra.mxu0 0.0
  %171 = vmatprep.subr.mxu0 0.0
  %172 = vmatpush1.msra.mxu0 0.0
  %173 = vmatprep.subr.mxu0 0.0
  %174 = vmatpush1.msra.mxu0 0.0
  %175 = vmatprep.subr.mxu0 0.0
  %176 = vmatpush1.msra.mxu0 0.0
  %177 = vmatprep.subr.mxu0 0.0
  %178 = vmatpush1.msra.mxu0 0.0
  %179 = vmatprep.subr.mxu0 0.0
  %180 = vmatpush1.msra.mxu0 0.0
  %181 = vmatprep.subr.mxu0 0.0
  %182 = vmatpush1.msra.mxu0 0.0
  %183 = vmatprep.subr.mxu0 0.0
  %184 = vmatpush1.msra.mxu0 0.0
  %185 = vmatprep.subr.mxu0 0.0
  %186 = vmatpush1.msra.mxu0 0.0
  %187 = vmatprep.subr.mxu0 0.0
  %188 = vmatpush1.msra.mxu0 0.0
  %189 = vmatprep.subr.mxu0 0.0
  %190 = vmatpush1.msra.mxu0 0.0
  %191 = vmatprep.subr.mxu0 0.0
  %192 = vmatpush1.msra.mxu0 0.0
  %193 = vmatprep.subr.mxu0 0.0
  %194 = vmatpush1.msra.mxu0 0.0
  %195 = vmatprep.subr.mxu0 0.0
  %196 = vmatpush1.msra.mxu0 0.0
  %197 = vmatprep.subr.mxu0 0.0
  %198 = vmatpush1.msra.mxu0 0.0
  %199 = vmatprep.subr.mxu0 0.0
  %200 = vmatpush1.msra.mxu0 0.0
  %201 = vmatprep.subr.mxu0 0.0
  %202 = vmatpush1.msra.mxu0 0.0
  %203 = vmatprep.subr.mxu0 0.0
  %204 = vmatpush1.msra.mxu0 0.0
  %205 = vmatprep.subr.mxu0 0.0
  %206 = vmatpush1.msra.mxu0 0.0
  %207 = vmatprep.subr.mxu0 0.0
  %208 = vmatpush1.msra.mxu0 0.0
  %209 = vmatprep.subr.mxu0 0.0
  %210 = vmatpush1.msra.mxu0 0.0
  %211 = vmatprep.subr.mxu0 0.0
  %212 = vmatpush1.msra.mxu0 0.0
  %213 = vmatprep.subr.mxu0 0.0
  %214 = vmatpush1.msra.mxu0 0.0
  %215 = vmatprep.subr.mxu0 0.0
  %216 = vmatpush1.msra.mxu0 0.0
  %217 = vmatprep.subr.mxu0 0.0
  %218 = vmatpush1.msra.mxu0 0.0
  %219 = vmatprep.mubr.f32.mxu0 0.0
  %220 = vmatmul.mubr.f32.gmra.mrb[0].mxu0 %v82
  %v221 = vpop.f32.mrb[0].mxu0
  %v222 = vadd.f32 %v66, %v221
  %v223 = vpop.f32.mrb[0].mxu0
  %v224 = vadd.f32 %v70, %v223
  %225 = vdwg.mxu0
  %226 = vmatprep.subr.mxu0 0.0
  %227 = vmatpush1.msra.mxu0 %v37
  %228 = vmatprep.subr.mxu0 0.0
  %229 = vmatpush1.msra.mxu0 %v42
  %230 = vmatprep.subr.mxu0 0.0
  %231 = vmatpush1.msra.mxu0 %v47
  %232 = vmatprep.subr.mxu0 0.0
  %233 = vmatpush1.msra.mxu0 %v52
  %234 = vmatprep.subr.mxu0 0.0
  %235 = vmatpush1.msra.mxu0 0.0
  %236 = vmatprep.subr.mxu0 0.0
  %237 = vmatpush1.msra.mxu0 0.0
  %238 = vmatprep.subr.mxu0 0.0
  %239 = vmatpush1.msra.mxu0 0.0
  %240 = vmatprep.subr.mxu0 0.0
  %241 = vmatpush1.msra.mxu0 0.0
  %242 = vmatprep.subr.mxu0 0.0
  %243 = vmatpush1.msra.mxu0 0.0
  %244 = vmatprep.subr.mxu0 0.0
  %245 = vmatpush1.msra.mxu0 0.0
  %246 = vmatprep.subr.mxu0 0.0
  %247 = vmatpush1.msra.mxu0 0.0
  %248 = vmatprep.subr.mxu0 0.0
  %249 = vmatpush1.msra.mxu0 0.0
  %250 = vmatprep.subr.mxu0 0.0
  %251 = vmatpush1.msra.mxu0 0.0
  %252 = vmatprep.subr.mxu0 0.0
  %253 = vmatpush1.msra.mxu0 0.0
  %254 = vmatprep.subr.mxu0 0.0
  %255 = vmatpush1.msra.mxu0 0.0
  %256 = vmatprep.subr.mxu0 0.0
  %257 = vmatpush1.msra.mxu0 0.0
  %258 = vmatprep.subr.mxu0 0.0
  %259 = vmatpush1.msra.mxu0 0.0
  %260 = vmatprep.subr.mxu0 0.0
  %261 = vmatpush1.msra.mxu0 0.0
  %262 = vmatprep.subr.mxu0 0.0
  %263 = vmatpush1.msra.mxu0 0.0
  %264 = vmatprep.subr.mxu0 0.0
  %265 = vmatpush1.msra.mxu0 0.0
  %266 = vmatprep.subr.mxu0 0.0
  %267 = vmatpush1.msra.mxu0 0.0
  %268 = vmatprep.subr.mxu0 0.0
  %269 = vmatpush1.msra.mxu0 0.0
  %270 = vmatprep.subr.mxu0 0.0
  %271 = vmatpush1.msra.mxu0 0.0
  %272 = vmatprep.subr.mxu0 0.0
  %273 = vmatpush1.msra.mxu0 0.0
  %274 = vmatprep.subr.mxu0 0.0
  %275 = vmatpush1.msra.mxu0 0.0
  %276 = vmatprep.subr.mxu0 0.0
  %277 = vmatpush1.msra.mxu0 0.0
  %278 = vmatprep.subr.mxu0 0.0
  %279 = vmatpush1.msra.mxu0 0.0
  %280 = vmatprep.subr.mxu0 0.0
  %281 = vmatpush1.msra.mxu0 0.0
  %282 = vmatprep.subr.mxu0 0.0
  %283 = vmatpush1.msra.mxu0 0.0
  %284 = vmatprep.subr.mxu0 0.0
  %285 = vmatpush1.msra.mxu0 0.0
  %286 = vmatprep.subr.mxu0 0.0
  %287 = vmatpush1.msra.mxu0 0.0
  %288 = vmatprep.subr.mxu0 0.0
  %289 = vmatpush1.msra.mxu0 0.0
  %290 = vmatprep.mubr.f32.mxu0 0.0
  %291 = vmatmul.mubr.f32.gmra.mrb[0].mxu0 %v82
  %v292 = vpop.f32.mrb[0].mxu0
  %v293 = vadd.f32 %v74, %v292
  %v294 = vpop.f32.mrb[0].mxu0
  %295 = vdwg.mxu0
  %v296 = vmax.f32 %v151, %v153
  %v297 = vmax.f32 %v296, %v222
  %v298 = vmax.f32 %v297, %v224
  %v299 = vmax.f32 %v298, %v293
  %v300 = vmul.f32 %v299, 0.2
  %v301 = vmax.f32 %v299, %v300
  %v302 = vld [vmem:[%s3] sm:$0xff]
  %v303 = vld [vmem:[%s3 + $0x8] sm:$0xff]
  %v304 = vld [vmem:[%s3 + $0x10] sm:$0xff]
  %v305 = vld [vmem:[%s3 + $0x18] sm:$0xff]
  %v306 = vld [vmem:[%s3 + $0x20] sm:$0xff]
  %v307 = vld [vmem:[%s3 + $0x28] sm:$0xff]
  %v308 = vld [vmem:[%s3 + $0x30] sm:$0xff]
  %v309 = vld [vmem:[%s3 + $0x38] sm:$0xff]
  %v310 = vld [vmem:[%s3 + $0x40] sm:$0xff]
  %v311 = vld [vmem:[%s3 + $0x48] sm:$0xff]
  %v312 = vld [vmem:[%s3 + $0x50] sm:$0xff]
  %v313 = vld [vmem:[%s3 + $0x58] sm:$0xff]
  %v314 = vld [vmem:[%s3 + $0x60] sm:$0xff]
  %v315 = vld [vmem:[%s3 + $0x68] sm:$0xff]
  %v316 = vld [vmem:[%s3 + $0x70] sm:$0xff]
  %v317 = vld [vmem:[%s3 + $0x78] sm:$0xff]
  %v318 = vld [vmem:[%s3 + $0x80] sm:$0xff]
  %v319 = vld [vmem:[%s3 + $0x88] sm:$0xff]
  %v320 = vld [vmem:[%s3 + $0x90] sm:$0xff]
  %v321 = vld [vmem:[%s3 + $0x98] sm:$0xff]
  %v322 = vld [vmem:[%s3 + $0xa0] sm:$0xff]
  %v323 = vld [vmem:[%s3 + $0xa8] sm:$0xff]
  %v324 = vld [vmem:[%s3 + $0xb0] sm:$0xff]
  %v325 = vld [vmem:[%s3 + $0xb8] sm:$0xff]
  %v326 = vld [vmem:[%s3 + $0xc0] sm:$0xff]
  %v327 = vld [vmem:[%s3 + $0xc8] sm:$0xff]
  %v328 = vld [vmem:[%s3 + $0xd0] sm:$0xff]
  %v329 = vld [vmem:[%s3 + $0xd8] sm:$0xff]
  %v330 = vld [vmem:[%s3 + $0xe0] sm:$0xff]
  %v331 = vld [vmem:[%s3 + $0xe8] sm:$0xff]
  %v332 = vld [vmem:[%s3 + $0xf0] sm:$0xff]
  %v333 = vld [vmem:[%s3 + $0xf8] sm:$0xff]
  %v334 = vld [vmem:[%s3 + $0x100] sm:$0xff]
  %v335 = vld [vmem:[%s3 + $0x108] sm:$0xff]
  %v336 = vld [vmem:[%s3 + $0x110] sm:$0xff]
  %v337 = vld [vmem:[%s3 + $0x118] sm:$0xff]
  %v338 = vld [vmem:[%s3 + $0x120] sm:$0xff]
  %v339 = vld [vmem:[%s3 + $0x128] sm:$0xff]
  %v340 = vld [vmem:[%s3 + $0x130] sm:$0xff]
  %v341 = vld [vmem:[%s3 + $0x138] sm:$0xff]
  %v342 = vld [vmem:[%s3 + $0x140] sm:$0xff]
  %v343 = vld [vmem:[%s3 + $0x148] sm:$0xff]
  %v344 = vld [vmem:[%s3 + $0x150] sm:$0xff]
  %v345 = vld [vmem:[%s3 + $0x158] sm:$0xff]
  %v346 = vld [vmem:[%s3 + $0x160] sm:$0xff]
  %v347 = vld [vmem:[%s3 + $0x168] sm:$0xff]
  %v348 = vld [vmem:[%s3 + $0x170] sm:$0xff]
  %v349 = vld [vmem:[%s3 + $0x178] sm:$0xff]
  %v350 = vld [vmem:[%s3 + $0x180] sm:$0xff]
  %v351 = vld [vmem:[%s3 + $0x188] sm:$0xff]
  %v352 = vld [vmem:[%s3 + $0x190] sm:$0xff]
  %v353 = vld [vmem:[%s3 + $0x198] sm:$0xff]
  %v354 = vld [vmem:[%s3 + $0x1a0] sm:$0xff]
  %v355 = vld [vmem:[%s3 + $0x1a8] sm:$0xff]
  %v356 = vld [vmem:[%s3 + $0x1b0] sm:$0xff]
  %v357 = vld [vmem:[%s3 + $0x1b8] sm:$0xff]
  %v358 = vld [vmem:[%s3 + $0x1c0] sm:$0xff]
  %v359 = vld [vmem:[%s3 + $0x1c8] sm:$0xff]
  %v360 = vld [vmem:[%s3 + $0x1d0] sm:$0xff]
  %v361 = vld [vmem:[%s3 + $0x1d8] sm:$0xff]
  %v362 = vld [vmem:[%s3 + $0x1e0] sm:$0xff]
  %v363 = vld [vmem:[%s3 + $0x1e8] sm:$0xff]
  %v364 = vld [vmem:[%s3 + $0x1f0] sm:$0xff]
  %v365 = vld [vmem:[%s3 + $0x1f8] sm:$0xff]
  %v366 = vld [vmem:[%s3 + $0x200] sm:$0xff]
  %v367 = vld [vmem:[%s3 + $0x208] sm:$0xff]
  %v368 = vld [vmem:[%s3 + $0x210] sm:$0xff]
  %v369 = vld [vmem:[%s3 + $0x218] sm:$0xff]
  %v370 = vld [vmem:[%s3 + $0x220] sm:$0xff]
  %v371 = vld [vmem:[%s3 + $0x228] sm:$0xff]
  %v372 = vld [vmem:[%s3 + $0x230] sm:$0xff]
  %v373 = vld [vmem:[%s3 + $0x238] sm:$0xff]
  %v374 = vld [vmem:[%s3 + $0x240] sm:$0xff]
  %v375 = vld [vmem:[%s3 + $0x248] sm:$0xff]
  %v376 = vld [vmem:[%s3 + $0x250] sm:$0xff]
  %v377 = vld [vmem:[%s3 + $0x258] sm:$0xff]
  %v378 = vld [vmem:[%s3 + $0x260] sm:$0xff]
  %v379 = vld [vmem:[%s3 + $0x268] sm:$0xff]
  %v380 = vld [vmem:[%s3 + $0x270] sm:$0xff]
  %v381 = vld [vmem:[%s3 + $0x278] sm:$0xff]
  %v382 = vld [vmem:[%s4] sm:$0x1f]
  %v384 = vlaneseq
  %v385 = vshrl.u32 %v384, 7
  %v386 = vsub.s32 0, %v385
  %v387 = vrot.slane %v382, %v386
  %v388 = vlaneseq
  %v389 = vshrl.u32 %v388, 7
  %v390 = vsub.s32 1, %v389
  %v391 = vrot.slane %v382, %v390
  %v392 = vlaneseq
  %v393 = vshrl.u32 %v392, 7
  %v394 = vsub.s32 2, %v393
  %v395 = vrot.slane %v382, %v394
  %v396 = vlaneseq
  %v397 = vshrl.u32 %v396, 7
  %v398 = vsub.s32 3, %v397
  %v399 = vrot.slane %v382, %v398
  %v400 = vlaneseq
  %v401 = vshrl.u32 %v400, 7
  %v402 = vsub.s32 4, %v401
  %v403 = vrot.slane %v382, %v402
  %409 = vmatprep.subr.mxu0 %v303
  %410 = vmatpush1.msra.mxu0 %v302
  %411 = vmatprep.subr.mxu0 %v308
  %412 = vmatpush1.msra.mxu0 %v307
  %413 = vmatprep.subr.mxu0 %v313
  %414 = vmatpush1.msra.mxu0 %v312
  %415 = vmatprep.subr.mxu0 %v318
  %416 = vmatpush1.msra.mxu0 %v317
  %417 = vmatprep.subr.mxu0 %v323
  %418 = vmatpush1.msra.mxu0 %v322
  %419 = vmatprep.subr.mxu0 %v328
  %420 = vmatpush1.msra.mxu0 %v327
  %421 = vmatprep.subr.mxu0 %v333
  %422 = vmatpush1.msra.mxu0 %v332
  %423 = vmatprep.subr.mxu0 %v338
  %424 = vmatpush1.msra.mxu0 %v337
  %425 = vmatprep.subr.mxu0 %v343
  %426 = vmatpush1.msra.mxu0 %v342
  %427 = vmatprep.subr.mxu0 %v348
  %428 = vmatpush1.msra.mxu0 %v347
  %429 = vmatprep.subr.mxu0 %v353
  %430 = vmatpush1.msra.mxu0 %v352
  %431 = vmatprep.subr.mxu0 %v358
  %432 = vmatpush1.msra.mxu0 %v357
  %433 = vmatprep.subr.mxu0 %v363
  %434 = vmatpush1.msra.mxu0 %v362
  %435 = vmatprep.subr.mxu0 %v368
  %436 = vmatpush1.msra.mxu0 %v367
  %437 = vmatprep.subr.mxu0 %v373
  %438 = vmatpush1.msra.mxu0 %v372
  %439 = vmatprep.subr.mxu0 %v378
  %440 = vmatpush1.msra.mxu0 %v377
  %441 = vmatprep.subr.mxu0 0.0
  %442 = vmatpush1.msra.mxu0 0.0
  %443 = vmatprep.subr.mxu0 0.0
  %444 = vmatpush1.msra.mxu0 0.0
  %445 = vmatprep.subr.mxu0 0.0
  %446 = vmatpush1.msra.mxu0 0.0
  %447 = vmatprep.subr.mxu0 0.0
  %448 = vmatpush1.msra.mxu0 0.0
  %449 = vmatprep.subr.mxu0 0.0
  %450 = vmatpush1.msra.mxu0 0.0
  %451 = vmatprep.subr.mxu0 0.0
  %452 = vmatpush1.msra.mxu0 0.0
  %453 = vmatprep.subr.mxu0 0.0
  %454 = vmatpush1.msra.mxu0 0.0
  %455 = vmatprep.subr.mxu0 0.0
  %456 = vmatpush1.msra.mxu0 0.0
  %457 = vmatprep.subr.mxu0 0.0
  %458 = vmatpush1.msra.mxu0 0.0
  %459 = vmatprep.subr.mxu0 0.0
  %460 = vmatpush1.msra.mxu0 0.0
  %461 = vmatprep.subr.mxu0 0.0
  %462 = vmatpush1.msra.mxu0 0.0
  %463 = vmatprep.subr.mxu0 0.0
  %464 = vmatpush1.msra.mxu0 0.0
  %465 = vmatprep.subr.mxu0 0.0
  %466 = vmatpush1.msra.mxu0 0.0
  %467 = vmatprep.subr.mxu0 0.0
  %468 = vmatpush1.msra.mxu0 0.0
  %469 = vmatprep.subr.mxu0 0.0
  %470 = vmatpush1.msra.mxu0 0.0
  %471 = vmatprep.subr.mxu0 0.0
  %472 = vmatpush1.msra.mxu0 0.0
  %473 = vmatprep.mubr.f32.mxu0 0.0
  %474 = vmatmul.mubr.f32.gmra.mrb[0].mxu0 %v301
  %v475 = vpop.f32.mrb[0].mxu0
  %v476 = vadd.f32 %v387, %v475
  %v477 = vpop.f32.mrb[0].mxu0
  %v478 = vadd.f32 %v391, %v477
  %479 = vdwg.mxu0
  %480 = vmatprep.subr.mxu0 %v305
  %481 = vmatpush1.msra.mxu0 %v304
  %482 = vmatprep.subr.mxu0 %v310
  %483 = vmatpush1.msra.mxu0 %v309
  %484 = vmatprep.subr.mxu0 %v315
  %485 = vmatpush1.msra.mxu0 %v314
  %486 = vmatprep.subr.mxu0 %v320
  %487 = vmatpush1.msra.mxu0 %v319
  %488 = vmatprep.subr.mxu0 %v325
  %489 = vmatpush1.msra.mxu0 %v324
  %490 = vmatprep.subr.mxu0 %v330
  %491 = vmatpush1.msra.mxu0 %v329
  %492 = vmatprep.subr.mxu0 %v335
  %493 = vmatpush1.msra.mxu0 %v334
  %494 = vmatprep.subr.mxu0 %v340
  %495 = vmatpush1.msra.mxu0 %v339
  %496 = vmatprep.subr.mxu0 %v345
  %497 = vmatpush1.msra.mxu0 %v344
  %498 = vmatprep.subr.mxu0 %v350
  %499 = vmatpush1.msra.mxu0 %v349
  %500 = vmatprep.subr.mxu0 %v355
  %501 = vmatpush1.msra.mxu0 %v354
  %502 = vmatprep.subr.mxu0 %v360
  %503 = vmatpush1.msra.mxu0 %v359
  %504 = vmatprep.subr.mxu0 %v365
  %505 = vmatpush1.msra.mxu0 %v364
  %506 = vmatprep.subr.mxu0 %v370
  %507 = vmatpush1.msra.mxu0 %v369
  %508 = vmatprep.subr.mxu0 %v375
  %509 = vmatpush1.msra.mxu0 %v374
  %510 = vmatprep.subr.mxu0 %v380
  %511 = vmatpush1.msra.mxu0 %v379
  %512 = vmatprep.subr.mxu0 0.0
  %513 = vmatpush1.msra.mxu0 0.0
  %514 = vmatprep.subr.mxu0 0.0
  %515 = vmatpush1.msra.mxu0 0.0
  %516 = vmatprep.subr.mxu0 0.0
  %517 = vmatpush1.msra.mxu0 0.0
  %518 = vmatprep.subr.mxu0 0.0
  %519 = vmatpush1.msra.mxu0 0.0
  %520 = vmatprep.subr.mxu0 0.0
  %521 = vmatpush1.msra.mxu0 0.0
  %522 = vmatprep.subr.mxu0 0.0
  %523 = vmatpush1.msra.mxu0 0.0
  %524 = vmatprep.subr.mxu0 0.0
  %525 = vmatpush1.msra.mxu0 0.0
  %526 = vmatprep.subr.mxu0 0.0
  %527 = vmatpush1.msra.mxu0 0.0
  %528 = vmatprep.subr.mxu0 0.0
  %529 = vmatpush1.msra.mxu0 0.0
  %530 = vmatprep.subr.mxu0 0.0
  %531 = vmatpush1.msra.mxu0 0.0
  %532 = vmatprep.subr.mxu0 0.0
  %533 = vmatpush1.msra.mxu0 0.0
  %534 = vmatprep.subr.mxu0 0.0
  %535 = vmatpush1.msra.mxu0 0.0
  %536 = vmatprep.subr.mxu0 0.0
  %537 = vmatpush1.msra.mxu0 0.0
  %538 = vmatprep.subr.mxu0 0.0
  %539 = vmatpush1.msra.mxu0 0.0
  %540 = vmatprep.subr.mxu0 0.0
  %541 = vmatpush1.msra.mxu0 0.0
  %542 = vmatprep.subr.mxu0 0.0
  %543 = vmatpush1.msra.mxu0 0.0
  %544 = vmatprep.mubr.f32.mxu0 0.0
  %545 = vmatmul.mubr.f32.gmra.mrb[0].mxu0 %v301
  %v546 = vpop.f32.mrb[0].mxu0
  %v547 = vadd.f32 %v395, %v546
  %v548 = vpop.f32.mrb[0].mxu0
  %v549 = vadd.f32 %v399, %v548
  %550 = vdwg.mxu0
  %551 = vmatprep.subr.mxu0 0.0
  %552 = vmatpush1.msra.mxu0 %v306
  %553 = vmatprep.subr.mxu0 0.0
  %554 = vmatpush1.msra.mxu0 %v311
  %555 = vmatprep.subr.mxu0 0.0
  %556 = vmatpush1.msra.mxu0 %v316
  %557 = vmatprep.subr.mxu0 0.0
  %558 = vmatpush1.msra.mxu0 %v321
  %559 = vmatprep.subr.mxu0 0.0
  %560 = vmatpush1.msra.mxu0 %v326
  %561 = vmatprep.subr.mxu0 0.0
  %562 = vmatpush1.msra.mxu0 %v331
  %563 = vmatprep.subr.mxu0 0.0
  %564 = vmatpush1.msra.mxu0 %v336
  %565 = vmatprep.subr.mxu0 0.0
  %566 = vmatpush1.msra.mxu0 %v341
  %567 = vmatprep.subr.mxu0 0.0
  %568 = vmatpush1.msra.mxu0 %v346
  %569 = vmatprep.subr.mxu0 0.0
  %570 = vmatpush1.msra.mxu0 %v351
  %571 = vmatprep.subr.mxu0 0.0
  %572 = vmatpush1.msra.mxu0 %v356
  %573 = vmatprep.subr.mxu0 0.0
  %574 = vmatpush1.msra.mxu0 %v361
  %575 = vmatprep.subr.mxu0 0.0
  %576 = vmatpush1.msra.mxu0 %v366
  %577 = vmatprep.subr.mxu0 0.0
  %578 = vmatpush1.msra.mxu0 %v371
  %579 = vmatprep.subr.mxu0 0.0
  %580 = vmatpush1.msra.mxu0 %v376
  %581 = vmatprep.subr.mxu0 0.0
  %582 = vmatpush1.msra.mxu0 %v381
  %583 = vmatprep.subr.mxu0 0.0
  %584 = vmatpush1.msra.mxu0 0.0
  %585 = vmatprep.subr.mxu0 0.0
  %586 = vmatpush1.msra.mxu0 0.0
  %587 = vmatprep.subr.mxu0 0.0
  %588 = vmatpush1.msra.mxu0 0.0
  %589 = vmatprep.subr.mxu0 0.0
  %590 = vmatpush1.msra.mxu0 0.0
  %591 = vmatprep.subr.mxu0 0.0
  %592 = vmatpush1.msra.mxu0 0.0
  %593 = vmatprep.subr.mxu0 0.0
  %594 = vmatpush1.msra.mxu0 0.0
  %595 = vmatprep.subr.mxu0 0.0
  %596 = vmatpush1.msra.mxu0 0.0
  %597 = vmatprep.subr.mxu0 0.0
  %598 = vmatpush1.msra.mxu0 0.0
  %599 = vmatprep.subr.mxu0 0.0
  %600 = vmatpush1.msra.mxu0 0.0
  %601 = vmatprep.subr.mxu0 0.0
  %602 = vmatpush1.msra.mxu0 0.0
  %603 = vmatprep.subr.mxu0 0.0
  %604 = vmatpush1.msra.mxu0 0.0
  %605 = vmatprep.subr.mxu0 0.0
  %606 = vmatpush1.msra.mxu0 0.0
  %607 = vmatprep.subr.mxu0 0.0
  %608 = vmatpush1.msra.mxu0 0.0
  %609 = vmatprep.subr.mxu0 0.0
  %610 = vmatpush1.msra.mxu0 0.0
  %611 = vmatprep.subr.mxu0 0.0
  %612 = vmatpush1.msra.mxu0 0.0
  %613 = vmatprep.subr.mxu0 0.0
  %614 = vmatpush1.msra.mxu0 0.0
  %615 = vmatprep.mubr.f32.mxu0 0.0
  %616 = vmatmul.mubr.f32.gmra.mrb[0].mxu0 %v301
  %v617 = vpop.f32.mrb[0].mxu0
  %v618 = vadd.f32 %v403, %v617
  %v619 = vpop.f32.mrb[0].mxu0
  %620 = vdwg.mxu0
  %v621 = vmax.f32 %v476, %v478
  %v622 = vmax.f32 %v621, %v547
  %v623 = vmax.f32 %v622, %v549
  %v624 = vmax.f32 %v623, %v618
  %v625 = vmul.f32 %v624, 0.2
  %v626 = vmax.f32 %v624, %v625
  %v627 = vld [vmem:[%s5] sm:$0xff]
  %v628 = vld [vmem:[%s5 + $0x8] sm:$0xff]
  %v629 = vld [vmem:[%s5 + $0x10] sm:$0xff]
  %v630 = vld [vmem:[%s5 + $0x18] sm:$0xff]
  %v631 = vld [vmem:[%s5 + $0x20] sm:$0xff]
  %v632 = vld [vmem:[%s5 + $0x28] sm:$0xff]
  %v633 = vld [vmem:[%s5 + $0x30] sm:$0xff]
  %v634 = vld [vmem:[%s5 + $0x38] sm:$0xff]
  %v635 = vld [vmem:[%s5 + $0x40] sm:$0xff]
  %v636 = vld [vmem:[%s5 + $0x48] sm:$0xff]
  %v637 = vld [vmem:[%s5 + $0x50] sm:$0xff]
  %v638 = vld [vmem:[%s5 + $0x58] sm:$0xff]
  %v639 = vld [vmem:[%s5 + $0x60] sm:$0xff]
  %v640 = vld [vmem:[%s5 + $0x68] sm:$0xff]
  %v641 = vld [vmem:[%s5 + $0x70] sm:$0xff]
  %v642 = vld [vmem:[%s5 + $0x78] sm:$0xff]
  %v643 = vld [vmem:[%s5 + $0x80] sm:$0xff]
  %v644 = vld [vmem:[%s5 + $0x88] sm:$0xff]
  %v645 = vld [vmem:[%s5 + $0x90] sm:$0xff]
  %v646 = vld [vmem:[%s5 + $0x98] sm:$0xff]
  %v647 = vld [vmem:[%s5 + $0xa0] sm:$0xff]
  %v648 = vld [vmem:[%s5 + $0xa8] sm:$0xff]
  %v649 = vld [vmem:[%s5 + $0xb0] sm:$0xff]
  %v650 = vld [vmem:[%s5 + $0xb8] sm:$0xff]
  %v651 = vld [vmem:[%s5 + $0xc0] sm:$0xff]
  %v652 = vld [vmem:[%s5 + $0xc8] sm:$0xff]
  %v653 = vld [vmem:[%s5 + $0xd0] sm:$0xff]
  %v654 = vld [vmem:[%s5 + $0xd8] sm:$0xff]
  %v655 = vld [vmem:[%s5 + $0xe0] sm:$0xff]
  %v656 = vld [vmem:[%s5 + $0xe8] sm:$0xff]
  %v657 = vld [vmem:[%s5 + $0xf0] sm:$0xff]
  %v658 = vld [vmem:[%s5 + $0xf8] sm:$0xff]
  %v659 = vld [vmem:[%s5 + $0x100] sm:$0xff]
  %v660 = vld [vmem:[%s5 + $0x108] sm:$0xff]
  %v661 = vld [vmem:[%s5 + $0x110] sm:$0xff]
  %v662 = vld [vmem:[%s5 + $0x118] sm:$0xff]
  %v663 = vld [vmem:[%s5 + $0x120] sm:$0xff]
  %v664 = vld [vmem:[%s5 + $0x128] sm:$0xff]
  %v665 = vld [vmem:[%s5 + $0x130] sm:$0xff]
  %v666 = vld [vmem:[%s5 + $0x138] sm:$0xff]
  %v667 = vld [vmem:[%s5 + $0x140] sm:$0xff]
  %v668 = vld [vmem:[%s5 + $0x148] sm:$0xff]
  %v669 = vld [vmem:[%s5 + $0x150] sm:$0xff]
  %v670 = vld [vmem:[%s5 + $0x158] sm:$0xff]
  %v671 = vld [vmem:[%s5 + $0x160] sm:$0xff]
  %v672 = vld [vmem:[%s5 + $0x168] sm:$0xff]
  %v673 = vld [vmem:[%s5 + $0x170] sm:$0xff]
  %v674 = vld [vmem:[%s5 + $0x178] sm:$0xff]
  %v675 = vld [vmem:[%s5 + $0x180] sm:$0xff]
  %v676 = vld [vmem:[%s5 + $0x188] sm:$0xff]
  %v677 = vld [vmem:[%s5 + $0x190] sm:$0xff]
  %v678 = vld [vmem:[%s5 + $0x198] sm:$0xff]
  %v679 = vld [vmem:[%s5 + $0x1a0] sm:$0xff]
  %v680 = vld [vmem:[%s5 + $0x1a8] sm:$0xff]
  %v681 = vld [vmem:[%s5 + $0x1b0] sm:$0xff]
  %v682 = vld [vmem:[%s5 + $0x1b8] sm:$0xff]
  %v683 = vld [vmem:[%s5 + $0x1c0] sm:$0xff]
  %v684 = vld [vmem:[%s5 + $0x1c8] sm:$0xff]
  %v685 = vld [vmem:[%s5 + $0x1d0] sm:$0xff]
  %v686 = vld [vmem:[%s5 + $0x1d8] sm:$0xff]
  %v687 = vld [vmem:[%s5 + $0x1e0] sm:$0xff]
  %v688 = vld [vmem:[%s5 + $0x1e8] sm:$0xff]
  %v689 = vld [vmem:[%s5 + $0x1f0] sm:$0xff]
  %v690 = vld [vmem:[%s5 + $0x1f8] sm:$0xff]
  %v691 = vld [vmem:[%s5 + $0x200] sm:$0xff]
  %v692 = vld [vmem:[%s5 + $0x208] sm:$0xff]
  %v693 = vld [vmem:[%s5 + $0x210] sm:$0xff]
  %v694 = vld [vmem:[%s5 + $0x218] sm:$0xff]
  %v695 = vld [vmem:[%s5 + $0x220] sm:$0xff]
  %v696 = vld [vmem:[%s5 + $0x228] sm:$0xff]
  %v697 = vld [vmem:[%s5 + $0x230] sm:$0xff]
  %v698 = vld [vmem:[%s5 + $0x238] sm:$0xff]
  %v699 = vld [vmem:[%s5 + $0x240] sm:$0xff]
  %v700 = vld [vmem:[%s5 + $0x248] sm:$0xff]
  %v701 = vld [vmem:[%s5 + $0x250] sm:$0xff]
  %v702 = vld [vmem:[%s5 + $0x258] sm:$0xff]
  %v703 = vld [vmem:[%s5 + $0x260] sm:$0xff]
  %v704 = vld [vmem:[%s5 + $0x268] sm:$0xff]
  %v705 = vld [vmem:[%s5 + $0x270] sm:$0xff]
  %v706 = vld [vmem:[%s5 + $0x278] sm:$0xff]
  %v707 = vld [vmem:[%s6] sm:$0x1f]
  %v709 = vlaneseq
  %v710 = vshrl.u32 %v709, 7
  %v711 = vsub.s32 0, %v710
  %v712 = vrot.slane %v707, %v711
  %v713 = vlaneseq
  %v714 = vshrl.u32 %v713, 7
  %v715 = vsub.s32 1, %v714
  %v716 = vrot.slane %v707, %v715
  %v717 = vlaneseq
  %v718 = vshrl.u32 %v717, 7
  %v719 = vsub.s32 2, %v718
  %v720 = vrot.slane %v707, %v719
  %v721 = vlaneseq
  %v722 = vshrl.u32 %v721, 7
  %v723 = vsub.s32 3, %v722
  %v724 = vrot.slane %v707, %v723
  %v725 = vlaneseq
  %v726 = vshrl.u32 %v725, 7
  %v727 = vsub.s32 4, %v726
  %v728 = vrot.slane %v707, %v727
  %734 = vmatprep.subr.mxu0 %v628
  %735 = vmatpush1.msra.mxu0 %v627
  %736 = vmatprep.subr.mxu0 %v633
  %737 = vmatpush1.msra.mxu0 %v632
  %738 = vmatprep.subr.mxu0 %v638
  %739 = vmatpush1.msra.mxu0 %v637
  %740 = vmatprep.subr.mxu0 %v643
  %741 = vmatpush1.msra.mxu0 %v642
  %742 = vmatprep.subr.mxu0 %v648
  %743 = vmatpush1.msra.mxu0 %v647
  %744 = vmatprep.subr.mxu0 %v653
  %745 = vmatpush1.msra.mxu0 %v652
  %746 = vmatprep.subr.mxu0 %v658
  %747 = vmatpush1.msra.mxu0 %v657
  %748 = vmatprep.subr.mxu0 %v663
  %749 = vmatpush1.msra.mxu0 %v662
  %750 = vmatprep.subr.mxu0 %v668
  %751 = vmatpush1.msra.mxu0 %v667
  %752 = vmatprep.subr.mxu0 %v673
  %753 = vmatpush1.msra.mxu0 %v672
  %754 = vmatprep.subr.mxu0 %v678
  %755 = vmatpush1.msra.mxu0 %v677
  %756 = vmatprep.subr.mxu0 %v683
  %757 = vmatpush1.msra.mxu0 %v682
  %758 = vmatprep.subr.mxu0 %v688
  %759 = vmatpush1.msra.mxu0 %v687
  %760 = vmatprep.subr.mxu0 %v693
  %761 = vmatpush1.msra.mxu0 %v692
  %762 = vmatprep.subr.mxu0 %v698
  %763 = vmatpush1.msra.mxu0 %v697
  %764 = vmatprep.subr.mxu0 %v703
  %765 = vmatpush1.msra.mxu0 %v702
  %766 = vmatprep.subr.mxu0 0.0
  %767 = vmatpush1.msra.mxu0 0.0
  %768 = vmatprep.subr.mxu0 0.0
  %769 = vmatpush1.msra.mxu0 0.0
  %770 = vmatprep.subr.mxu0 0.0
  %771 = vmatpush1.msra.mxu0 0.0
  %772 = vmatprep.subr.mxu0 0.0
  %773 = vmatpush1.msra.mxu0 0.0
  %774 = vmatprep.subr.mxu0 0.0
  %775 = vmatpush1.msra.mxu0 0.0
  %776 = vmatprep.subr.mxu0 0.0
  %777 = vmatpush1.msra.mxu0 0.0
  %778 = vmatprep.subr.mxu0 0.0
  %779 = vmatpush1.msra.mxu0 0.0
  %780 = vmatprep.subr.mxu0 0.0
  %781 = vmatpush1.msra.mxu0 0.0
  %782 = vmatprep.subr.mxu0 0.0
  %783 = vmatpush1.msra.mxu0 0.0
  %784 = vmatprep.subr.mxu0 0.0
  %785 = vmatpush1.msra.mxu0 0.0
  %786 = vmatprep.subr.mxu0 0.0
  %787 = vmatpush1.msra.mxu0 0.0
  %788 = vmatprep.subr.mxu0 0.0
  %789 = vmatpush1.msra.mxu0 0.0
  %790 = vmatprep.subr.mxu0 0.0
  %791 = vmatpush1.msra.mxu0 0.0
  %792 = vmatprep.subr.mxu0 0.0
  %793 = vmatpush1.msra.mxu0 0.0
  %794 = vmatprep.subr.mxu0 0.0
  %795 = vmatpush1.msra.mxu0 0.0
  %796 = vmatprep.subr.mxu0 0.0
  %797 = vmatpush1.msra.mxu0 0.0
  %798 = vmatprep.mubr.f32.mxu0 0.0
  %799 = vmatmul.mubr.f32.gmra.mrb[0].mxu0 %v626
  %v800 = vpop.f32.mrb[0].mxu0
  %v801 = vadd.f32 %v712, %v800
  %v802 = vpop.f32.mrb[0].mxu0
  %v803 = vadd.f32 %v716, %v802
  %804 = vdwg.mxu0
  %805 = vmatprep.subr.mxu0 %v630
  %806 = vmatpush1.msra.mxu0 %v629
  %807 = vmatprep.subr.mxu0 %v635
  %808 = vmatpush1.msra.mxu0 %v634
  %809 = vmatprep.subr.mxu0 %v640
  %810 = vmatpush1.msra.mxu0 %v639
  %811 = vmatprep.subr.mxu0 %v645
  %812 = vmatpush1.msra.mxu0 %v644
  %813 = vmatprep.subr.mxu0 %v650
  %814 = vmatpush1.msra.mxu0 %v649
  %815 = vmatprep.subr.mxu0 %v655
  %816 = vmatpush1.msra.mxu0 %v654
  %817 = vmatprep.subr.mxu0 %v660
  %818 = vmatpush1.msra.mxu0 %v659
  %819 = vmatprep.subr.mxu0 %v665
  %820 = vmatpush1.msra.mxu0 %v664
  %821 = vmatprep.subr.mxu0 %v670
  %822 = vmatpush1.msra.mxu0 %v669
  %823 = vmatprep.subr.mxu0 %v675
  %824 = vmatpush1.msra.mxu0 %v674
  %825 = vmatprep.subr.mxu0 %v680
  %826 = vmatpush1.msra.mxu0 %v679
  %827 = vmatprep.subr.mxu0 %v685
  %828 = vmatpush1.msra.mxu0 %v684
  %829 = vmatprep.subr.mxu0 %v690
  %830 = vmatpush1.msra.mxu0 %v689
  %831 = vmatprep.subr.mxu0 %v695
  %832 = vmatpush1.msra.mxu0 %v694
  %833 = vmatprep.subr.mxu0 %v700
  %834 = vmatpush1.msra.mxu0 %v699
  %835 = vmatprep.subr.mxu0 %v705
  %836 = vmatpush1.msra.mxu0 %v704
  %837 = vmatprep.subr.mxu0 0.0
  %838 = vmatpush1.msra.mxu0 0.0
  %839 = vmatprep.subr.mxu0 0.0
  %840 = vmatpush1.msra.mxu0 0.0
  %841 = vmatprep.subr.mxu0 0.0
  %842 = vmatpush1.msra.mxu0 0.0
  %843 = vmatprep.subr.mxu0 0.0
  %844 = vmatpush1.msra.mxu0 0.0
  %845 = vmatprep.subr.mxu0 0.0
  %846 = vmatpush1.msra.mxu0 0.0
  %847 = vmatprep.subr.mxu0 0.0
  %848 = vmatpush1.msra.mxu0 0.0
  %849 = vmatprep.subr.mxu0 0.0
  %850 = vmatpush1.msra.mxu0 0.0
  %851 = vmatprep.subr.mxu0 0.0
  %852 = vmatpush1.msra.mxu0 0.0
  %853 = vmatprep.subr.mxu0 0.0
  %854 = vmatpush1.msra.mxu0 0.0
  %855 = vmatprep.subr.mxu0 0.0
  %856 = vmatpush1.msra.mxu0 0.0
  %857 = vmatprep.subr.mxu0 0.0
  %858 = vmatpush1.msra.mxu0 0.0
  %859 = vmatprep.subr.mxu0 0.0
  %860 = vmatpush1.msra.mxu0 0.0
  %861 = vmatprep.subr.mxu0 0.0
  %862 = vmatpush1.msra.mxu0 0.0
  %863 = vmatprep.subr.mxu0 0.0
  %864 = vmatpush1.msra.mxu0 0.0
  %865 = vmatprep.subr.mxu0 0.0
  %866 = vmatpush1.msra.mxu0 0.0
  %867 = vmatprep.subr.mxu0 0.0
  %868 = vmatpush1.msra.mxu0 0.0
  %869 = vmatprep.mubr.f32.mxu0 0.0
  %870 = vmatmul.mubr.f32.gmra.mrb[0].mxu0 %v626
  %v871 = vpop.f32.mrb[0].mxu0
  %v872 = vadd.f32 %v720, %v871
  %v873 = vpop.f32.mrb[0].mxu0
  %v874 = vadd.f32 %v724, %v873
  %875 = vdwg.mxu0
  %876 = vmatprep.subr.mxu0 0.0
  %877 = vmatpush1.msra.mxu0 %v631
  %878 = vmatprep.subr.mxu0 0.0
  %879 = vmatpush1.msra.mxu0 %v636
  %880 = vmatprep.subr.mxu0 0.0
  %881 = vmatpush1.msra.mxu0 %v641
  %882 = vmatprep.subr.mxu0 0.0
  %883 = vmatpush1.msra.mxu0 %v646
  %884 = vmatprep.subr.mxu0 0.0
  %885 = vmatpush1.msra.mxu0 %v651
  %886 = vmatprep.subr.mxu0 0.0
  %887 = vmatpush1.msra.mxu0 %v656
  %888 = vmatprep.subr.mxu0 0.0
  %889 = vmatpush1.msra.mxu0 %v661
  %890 = vmatprep.subr.mxu0 0.0
  %891 = vmatpush1.msra.mxu0 %v666
  %892 = vmatprep.subr.mxu0 0.0
  %893 = vmatpush1.msra.mxu0 %v671
  %894 = vmatprep.subr.mxu0 0.0
  %895 = vmatpush1.msra.mxu0 %v676
  %896 = vmatprep.subr.mxu0 0.0
  %897 = vmatpush1.msra.mxu0 %v681
  %898 = vmatprep.subr.mxu0 0.0
  %899 = vmatpush1.msra.mxu0 %v686
  %900 = vmatprep.subr.mxu0 0.0
  %901 = vmatpush1.msra.mxu0 %v691
  %902 = vmatprep.subr.mxu0 0.0
  %903 = vmatpush1.msra.mxu0 %v696
  %904 = vmatprep.subr.mxu0 0.0
  %905 = vmatpush1.msra.mxu0 %v701
  %906 = vmatprep.subr.mxu0 0.0
  %907 = vmatpush1.msra.mxu0 %v706
  %908 = vmatprep.subr.mxu0 0.0
  %909 = vmatpush1.msra.mxu0 0.0
  %910 = vmatprep.subr.mxu0 0.0
  %911 = vmatpush1.msra.mxu0 0.0
  %912 = vmatprep.subr.mxu0 0.0
  %913 = vmatpush1.msra.mxu0 0.0
  %914 = vmatprep.subr.mxu0 0.0
  %915 = vmatpush1.msra.mxu0 0.0
  %916 = vmatprep.subr.mxu0 0.0
  %917 = vmatpush1.msra.mxu0 0.0
  %918 = vmatprep.subr.mxu0 0.0
  %919 = vmatpush1.msra.mxu0 0.0
  %920 = vmatprep.subr.mxu0 0.0
  %921 = vmatpush1.msra.mxu0 0.0
  %922 = vmatprep.subr.mxu0 0.0
  %923 = vmatpush1.msra.mxu0 0.0
  %924 = vmatprep.subr.mxu0 0.0
  %925 = vmatpush1.msra.mxu0 0.0
  %926 = vmatprep.subr.mxu0 0.0
  %927 = vmatpush1.msra.mxu0 0.0
  %928 = vmatprep.subr.mxu0 0.0
  %929 = vmatpush1.msra.mxu0 0.0
  %930 = vmatprep.subr.mxu0 0.0
  %931 = vmatpush1.msra.mxu0 0.0
  %932 = vmatprep.subr.mxu0 0.0
  %933 = vmatpush1.msra.mxu0 0.0
  %934 = vmatprep.subr.mxu0 0.0
  %935 = vmatpush1.msra.mxu0 0.0
  %936 = vmatprep.subr.mxu0 0.0
  %937 = vmatpush1.msra.mxu0 0.0
  %938 = vmatprep.subr.mxu0 0.0
  %939 = vmatpush1.msra.mxu0 0.0
  %940 = vmatprep.mubr.f32.mxu0 0.0
  %941 = vmatmul.mubr.f32.gmra.mrb[0].mxu0 %v626
  %v942 = vpop.f32.mrb[0].mxu0
  %v943 = vadd.f32 %v728, %v942
  %v944 = vpop.f32.mrb[0].mxu0
  %945 = vdwg.mxu0
  %v946 = vmax.f32 %v801, %v803
  %v947 = vmax.f32 %v946, %v872
  %v948 = vmax.f32 %v947, %v874
  %v949 = vmax.f32 %v948, %v943
  %v950 = vmul.f32 %v949, 0.2
  %v951 = vmax.f32 %v949, %v950
  %v952 = vld [vmem:[%s7] sm:$0xff]
  %v953 = vld [vmem:[%s7 + $0x8] sm:$0xff]
  %v954 = vld [vmem:[%s7 + $0x10] sm:$0xff]
  %v955 = vld [vmem:[%s7 + $0x18] sm:$0xff]
  %v956 = vld [vmem:[%s7 + $0x20] sm:$0xff]
  %v957 = vld [vmem:[%s7 + $0x28] sm:$0xff]
  %v958 = vld [vmem:[%s7 + $0x30] sm:$0xff]
  %v959 = vld [vmem:[%s7 + $0x38] sm:$0xff]
  %v960 = vld [vmem:[%s7 + $0x40] sm:$0xff]
  %v961 = vld [vmem:[%s7 + $0x48] sm:$0xff]
  %v962 = vld [vmem:[%s7 + $0x50] sm:$0xff]
  %v963 = vld [vmem:[%s7 + $0x58] sm:$0xff]
  %v964 = vld [vmem:[%s7 + $0x60] sm:$0xff]
  %v965 = vld [vmem:[%s7 + $0x68] sm:$0xff]
  %v966 = vld [vmem:[%s7 + $0x70] sm:$0xff]
  %v967 = vld [vmem:[%s7 + $0x78] sm:$0xff]
  %v968 = vld [vmem:[%s8] sm:$0x1]
  %v970 = vlaneseq
  %v971 = vshrl.u32 %v970, 7
  %v972 = vsub.s32 0, %v971
  %v973 = vrot.slane %v968, %v972
  %975 = vmatprep.subr.mxu0 0.0
  %976 = vmatpush1.msra.mxu0 %v952
  %977 = vmatprep.subr.mxu0 0.0
  %978 = vmatpush1.msra.mxu0 %v953
  %979 = vmatprep.subr.mxu0 0.0
  %980 = vmatpush1.msra.mxu0 %v954
  %981 = vmatprep.subr.mxu0 0.0
  %982 = vmatpush1.msra.mxu0 %v955
  %983 = vmatprep.subr.mxu0 0.0
  %984 = vmatpush1.msra.mxu0 %v956
  %985 = vmatprep.subr.mxu0 0.0
  %986 = vmatpush1.msra.mxu0 %v957
  %987 = vmatprep.subr.mxu0 0.0
  %988 = vmatpush1.msra.mxu0 %v958
  %989 = vmatprep.subr.mxu0 0.0
  %990 = vmatpush1.msra.mxu0 %v959
  %991 = vmatprep.subr.mxu0 0.0
  %992 = vmatpush1.msra.mxu0 %v960
  %993 = vmatprep.subr.mxu0 0.0
  %994 = vmatpush1.msra.mxu0 %v961
  %995 = vmatprep.subr.mxu0 0.0
  %996 = vmatpush1.msra.mxu0 %v962
  %997 = vmatprep.subr.mxu0 0.0
  %998 = vmatpush1.msra.mxu0 %v963
  %999 = vmatprep.subr.mxu0 0.0
  %1000 = vmatpush1.msra.mxu0 %v964
  %1001 = vmatprep.subr.mxu0 0.0
  %1002 = vmatpush1.msra.mxu0 %v965
  %1003 = vmatprep.subr.mxu0 0.0
  %1004 = vmatpush1.msra.mxu0 %v966
  %1005 = vmatprep.subr.mxu0 0.0
  %1006 = vmatpush1.msra.mxu0 %v967
  %1007 = vmatprep.subr.mxu0 0.0
  %1008 = vmatpush1.msra.mxu0 0.0
  %1009 = vmatprep.subr.mxu0 0.0
  %1010 = vmatpush1.msra.mxu0 0.0
  %1011 = vmatprep.subr.mxu0 0.0
  %1012 = vmatpush1.msra.mxu0 0.0
  %1013 = vmatprep.subr.mxu0 0.0
  %1014 = vmatpush1.msra.mxu0 0.0
  %1015 = vmatprep.subr.mxu0 0.0
  %1016 = vmatpush1.msra.mxu0 0.0
  %1017 = vmatprep.subr.mxu0 0.0
  %1018 = vmatpush1.msra.mxu0 0.0
  %1019 = vmatprep.subr.mxu0 0.0
  %1020 = vmatpush1.msra.mxu0 0.0
  %1021 = vmatprep.subr.mxu0 0.0
  %1022 = vmatpush1.msra.mxu0 0.0
  %1023 = vmatprep.subr.mxu0 0.0
  %1024 = vmatpush1.msra.mxu0 0.0
  %1025 = vmatprep.subr.mxu0 0.0
  %1026 = vmatpush1.msra.mxu0 0.0
  %1027 = vmatprep.subr.mxu0 0.0
  %1028 = vmatpush1.msra.mxu0 0.0
  %1029 = vmatprep.subr.mxu0 0.0
  %1030 = vmatpush1.msra.mxu0 0.0
  %1031 = vmatprep.subr.mxu0 0.0
  %1032 = vmatpush1.msra.mxu0 0.0
  %1033 = vmatprep.subr.mxu0 0.0
  %1034 = vmatpush1.msra.mxu0 0.0
  %1035 = vmatprep.subr.mxu0 0.0
  %1036 = vmatpush1.msra.mxu0 0.0
  %1037 = vmatprep.subr.mxu0 0.0
  %1038 = vmatpush1.msra.mxu0 0.0
  %1039 = vmatprep.mubr.f32.mxu0 0.0
  %1040 = vmatmul.mubr.f32.gmra.mrb[0].mxu0 %v951
  %v1041 = vpop.f32.mrb[0].mxu0
  %v1042 = vadd.f32 %v973, %v1041
  %v1043 = vpop.f32.mrb[0].mxu0
  %1044 = vdwg.mxu0
  %v1045 = vmul.f32 %v1042, 0.5
  %v1046 = vtanh.pop %v1045
  %v1047 = vmul.f32 %v1046, 0.5
  %v1048 = vadd.f32 %v1047, 0.5
  %1049 = vst [vmem:[%s9] sm:$0xff] %v1048
  // Predicated region
  $region38: #{discriminator_forward.1} parent=0 // pred_check
    _
  $region39: #{discriminator_forward.1} parent=0 // pred_check_branch
    %1051 = sbr.rel (0) target = $region41
  $region40: #{discriminator_forward.1} parent=0 // pred_region
    _
  $region41: #{discriminator_forward.1} parent=0 // pred_fallthru
    _
  // Predicated region
  $region42: #{discriminator_forward.1} parent=0 // pred_check
    _
  $region43: #{discriminator_forward.1} parent=0 // pred_check_branch
    %1053 = sbr.rel (0) target = $region45
  $region44: #{discriminator_forward.1} parent=0 // pred_region
    _
  $region45: #{discriminator_forward.1} parent=0 // pred_fallthru
    _

</llo_original>
